<compile_context>
chip_gen: v6e
topology: v6e:2x2x1
jax: 0.10.0
libtpu: 0.0.40
codegen_flags: <defaults>
</compile_context>

<pallas_src>
import functools

import jax
import jax.numpy as jnp
from jax.experimental import pallas as pl
from jax.experimental.pallas import tpu as pltpu


LANE = 128


def _round_up(x, m):
    return ((x + m - 1) // m) * m


# ---------------------------------------------------------------------------
# Fused MLP kernel:  out = act_L(... act_1(act_0(x @ W0 + b0) @ W1 + b1) ...)
# refs = (x, [W0, b0, W1, b1, ...], out). Intermediates live in vregs/VMEM.
# ---------------------------------------------------------------------------
def _fused_mlp_kernel(*refs, activations):
    n_layers = len(activations)
    x_ref = refs[0]
    o_ref = refs[1 + 2 * n_layers]

    h = x_ref[...]                                    # bf16 (tile_b, K0), no cast
    for li, act in enumerate(activations):
        w_ref = refs[1 + 2 * li]                      # (K, N) bf16, VMEM-resident
        b_ref = refs[2 + 2 * li]                      # (1, N) f32
        y = jnp.dot(h, w_ref[...], preferred_element_type=jnp.float32)
        y = y + b_ref[...]                            # implicit (1, N) broadcast
        if act == "relu":
            y = jnp.maximum(y, 0.0)
        elif act == "tanh":
            y = jnp.tanh(y)                           # f32 EUP tanh (free slot)
        elif act != "none":
            raise ValueError(f"unsupported activation: {act}")
        if li + 1 < n_layers:
            h = y.astype(jnp.bfloat16)                # feed next MXU matmul in bf16
        else:
            o_ref[...] = y.astype(o_ref.dtype)        # bf16, lane-dense store


def _estimate_vmem_bytes(tile_b, k0, weights, param_bufs):
    """Rough VMEM budget: activations double-buffered, params x param_bufs."""
    nlast = weights[-1].shape[1]
    widest = max(w.shape[1] for w in weights)
    est = 2 * tile_b * k0 * 2                         # bf16 input, double-buffered
    est += 2 * tile_b * nlast * 2                     # bf16 output, double-buffered
    for w in weights:
        kp, np_ = w.shape
        est += param_bufs * (kp * np_ * 2 + np_ * 4)  # bf16 W + f32 b
    est += 3 * tile_b * widest * 4                    # f32 intermediates / headroom
    return est


def fused_mlp_forward(x_bf16, weights_bf16, biases_f32, activations, *,
                      tile_b, single_buffer_params=True):
    """Single pallas_call for the whole MLP. x_bf16: (Bp, K0), Bp % tile_b == 0."""
    Bp, K0 = x_bf16.shape
    assert Bp % tile_b == 0
    Nlast = weights_bf16[-1].shape[1]

    # Constant index_map -> parameters are resident across all grid steps;
    # request a single buffer for them instead of the default double buffer.
    param_kwargs = {"pipeline_mode": pl.Buffered(1)} if single_buffer_params else {}

    in_specs = [pl.BlockSpec((tile_b, K0), lambda i: (i, 0))]
    inputs = [x_bf16]
    for w, b in zip(weights_bf16, biases_f32):
        Kp, Np = w.shape
        in_specs.append(pl.BlockSpec((Kp, Np), lambda i: (0, 0), **param_kwargs))
        in_specs.append(pl.BlockSpec((1, Np), lambda i: (0, 0), **param_kwargs))
        inputs.append(w)
        inputs.append(b)

    param_bufs = 1 if single_buffer_params else 2
    vmem_limit = int(min(
        max(2 * _estimate_vmem_bytes(tile_b, K0, weights_bf16, param_bufs), 32 << 20),
        56 << 20))

    kernel = functools.partial(_fused_mlp_kernel, activations=tuple(activations))
    return pl.pallas_call(
        kernel,
        out_shape=jax.ShapeDtypeStruct((Bp, Nlast), jnp.bfloat16),
        grid=(Bp // tile_b,),
        in_specs=in_specs,
        out_specs=pl.BlockSpec((tile_b, Nlast), lambda i: (i, 0)),
        compiler_params=pltpu.CompilerParams(
            dimension_semantics=("parallel",),        # batch rows independent
            vmem_limit_bytes=vmem_limit,
        ),
    )(*inputs)


def _choose_batch_tiling(B, max_tile=512):
    """Pick (Bp, tile_b) with Bp % tile_b == 0, <= ~12.5% padded rows, and at
    least 2 grid steps whenever the batch allows (keeps both v7x TCs busy)."""
    Bp_min = _round_up(max(B, 1), 8)
    if Bp_min <= 8:
        return Bp_min, Bp_min
    for t in (max_tile, 256, 128, 64, 32, 16, 8):
        if 2 * t > Bp_min:
            continue
        Bp = _round_up(B, t)
        if (Bp - B) * 8 <= Bp:                        # padded rows <= 12.5%
            return Bp, t
    return Bp_min, 8


# ---------------------------------------------------------------------------
# build_network / Generator equivalents (parameter setup is plain JAX glue)
# ---------------------------------------------------------------------------
def build_network_params(config, key):
    """Per-layer [in,out] weights / biases mimicking nn.Linear's default
    uniform(-1/sqrt(fan_in), 1/sqrt(fan_in)). Returns unpadded f32 params."""
    params = []
    for layer_cfg in config:
        in_dim = layer_cfg["input_dim"]
        out_dim = layer_cfg["output_dim"]
        key, kw, kb = jax.random.split(key, 3)
        bound = 1.0 / float(in_dim) ** 0.5
        w = jax.random.uniform(kw, (in_dim, out_dim), jnp.float32, -bound, bound)
        b = jax.random.uniform(kb, (1, out_dim), jnp.float32, -bound, bound)
        params.append((w, b, layer_cfg.get("activation", "none")))
    return params


class Generator:
    """JAX/Pallas port of the PyTorch BEGAN Generator (sequential MLP)."""

    def __init__(self, config, key):
        self.params = build_network_params(config, key)   # unpadded f32 reference
        self.noise_dim = config[0].get("input_dim")
        self.out_dim = config[-1]["output_dim"]
        self.activations = [act for _, _, act in self.params]

        # Zero-pad hidden/output feature dims to multiples of 128 (lane-dense).
        # First layer's K stays at noise_dim (full-extent last dim is legal) so
        # the input needs no feature padding. Padded weight rows/cols and bias
        # entries are zero => math unchanged; padded activation columns stay 0.
        # TODO(synk): for real BEGAN configs with a very wide final layer
        # (e.g. 64*64*3 outputs) add N-tiling of the last layer for v7x's 64 MiB VMEM.
        self.weights_bf16 = []
        self.biases_f32 = []
        prev_out_p = self.noise_dim
        for w, b, _ in self.params:
            in_dim, out_dim = w.shape
            in_p = prev_out_p                       # matches previous padded width
            out_p = _round_up(out_dim, LANE)
            w_p = jnp.zeros((in_p, out_p), jnp.float32).at[:in_dim, :out_dim].set(w)
            b_p = jnp.zeros((1, out_p), jnp.float32).at[:, :out_dim].set(b)
            self.weights_bf16.append(w_p.astype(jnp.bfloat16))  # halve HBM/VMEM bytes
            self.biases_f32.append(b_p)
            prev_out_p = out_p
        self._single_buffer_params = True           # flipped off if unsupported

    def __call__(self, z):
        B, nd = z.shape
        assert nd == self.noise_dim
        Bp, tile_b = _choose_batch_tiling(B)
        # Fused batch-pad + bf16 cast: no padded f32 copy, no K padding in HBM.
        z_p = jnp.pad(z, ((0, Bp - B), (0, 0))).astype(jnp.bfloat16)
        try:
            out_p = fused_mlp_forward(
                z_p, self.weights_bf16, self.biases_f32, self.activations,
                tile_b=tile_b, single_buffer_params=self._single_buffer_params)
        except Exception:
            # pl.Buffered(1) single-buffering unsupported on this jax/libtpu ->
            # fall back to default double-buffered parameter specs (same math).
            self._single_buffer_params = False
            out_p = fused_mlp_forward(
                z_p, self.weights_bf16, self.biases_f32, self.activations,
                tile_b=tile_b, single_buffer_params=False)
        return out_p[:B, : self.out_dim]            # bf16, tanh-bounded


# Pure-JAX f32 reference (true module semantics) for correctness check.
def reference_forward(params, z):
    h = z
    for w, b, act in params:
        h = h @ w + b
        if act == "relu":
            h = jnp.maximum(h, 0.0)
        elif act == "tanh":
            h = jnp.tanh(h)
    return h


if __name__ == "__main__":
    # Small generator config consistent with the module's forward (MLP on z).
    config = [
        {"type": "linear", "input_dim": 32, "output_dim": 64, "activation": "relu"},
        {"type": "linear", "input_dim": 64, "output_dim": 128, "activation": "relu"},
        {"type": "linear", "input_dim": 128, "output_dim": 256, "activation": "tanh"},
    ]

    key = jax.random.PRNGKey(0)
    key, kz1, kz2 = jax.random.split(key, 3)

    gen = Generator(config, key)

    # Case 1: tiny batch, single-tile grid.
    batch = 8
    z = jax.random.normal(kz1, (batch, gen.noise_dim), dtype=jnp.float32)
    out = jax.block_until_ready(gen(z))
    ref = reference_forward(gen.params, z)
    assert out.shape == (batch, config[-1]["output_dim"])
    assert out.dtype == jnp.bfloat16
    # bf16 weights/activations/output vs pure-f32 reference (tanh-bounded).
    assert jnp.allclose(out.astype(jnp.float32), ref, atol=3e-2, rtol=3e-2), \
        "mismatch vs reference (batch=8)"

    # Case 2: batch that exercises the multi-step grid and batch-row padding.
    batch2 = 50
    z2 = jax.random.normal(kz2, (batch2, gen.noise_dim), dtype=jnp.float32)
    out2 = jax.block_until_ready(gen(z2))
    ref2 = reference_forward(gen.params, z2)
    assert out2.shape == (batch2, config[-1]["output_dim"])
    assert jnp.allclose(out2.astype(jnp.float32), ref2, atol=3e-2, rtol=3e-2), \
        "mismatch vs reference (batch=50)"

    print("KERNEL_OK")
</pallas_src>

<mosaic_0001>
module attributes {stable_mosaic.version = 11 : i64} {
  func.func @_fused_mlp_kernel(%arg0: i32, %arg1: memref<8x32xbf16, #tpu.memory_space<vmem>>, %arg2: memref<32x128xbf16, #tpu.memory_space<vmem>>, %arg3: memref<1x128xf32, #tpu.memory_space<vmem>>, %arg4: memref<128x128xbf16, #tpu.memory_space<vmem>>, %arg5: memref<1x128xf32, #tpu.memory_space<vmem>>, %arg6: memref<128x256xbf16, #tpu.memory_space<vmem>>, %arg7: memref<1x256xf32, #tpu.memory_space<vmem>>, %arg8: memref<8x256xbf16, #tpu.memory_space<vmem>>) attributes {dimension_semantics = [#tpu.dimension_semantics<parallel>], iteration_bounds = array<i64: 1>, scalar_prefetch = 0 : i64, scratch_operands = 0 : i64, tpu.core_type = #tpu.core_type<tc>, window_params = [{transform_indices = @transform_0, window_bounds = array<i64: 8, 32>}, {pipeline_mode = #tpu.pipeline_mode<synchronous>, transform_indices = @transform_1, window_bounds = array<i64: 32, 128>}, {pipeline_mode = #tpu.pipeline_mode<synchronous>, transform_indices = @transform_2, window_bounds = array<i64: 1, 128>}, {pipeline_mode = #tpu.pipeline_mode<synchronous>, transform_indices = @transform_3, window_bounds = array<i64: 128, 128>}, {pipeline_mode = #tpu.pipeline_mode<synchronous>, transform_indices = @transform_4, window_bounds = array<i64: 1, 128>}, {pipeline_mode = #tpu.pipeline_mode<synchronous>, transform_indices = @transform_5, window_bounds = array<i64: 128, 256>}, {pipeline_mode = #tpu.pipeline_mode<synchronous>, transform_indices = @transform_6, window_bounds = array<i64: 1, 256>}, {transform_indices = @transform_7, window_bounds = array<i64: 8, 256>}]} {
    %c0 = arith.constant 0 : index
    %c0_0 = arith.constant 0 : index
    %0 = vector.load %arg1[%c0, %c0_0] : memref<8x32xbf16, #tpu.memory_space<vmem>>, vector<8x32xbf16>
    %c0_1 = arith.constant 0 : index
    %c0_2 = arith.constant 0 : index
    %1 = vector.load %arg2[%c0_1, %c0_2] : memref<32x128xbf16, #tpu.memory_space<vmem>>, vector<32x128xbf16>
    %cst = arith.constant dense<0.000000e+00> : vector<8x128xf32>
    %2 = tpu.matmul %0, %1, %cst {dimension_numbers = #tpu.dot_dimension_numbers<[1], [0], [0], [1], [0, 0, 1, 1], [], []>} : vector<8x32xbf16>, vector<32x128xbf16>, vector<8x128xf32> -> vector<8x128xf32>
    %c0_3 = arith.constant 0 : index
    %c0_4 = arith.constant 0 : index
    %3 = vector.load %arg3[%c0_3, %c0_4] : memref<1x128xf32, #tpu.memory_space<vmem>>, vector<1x128xf32>
    %4 = vector.broadcast %3 : vector<1x128xf32> to vector<8x128xf32>
    %5 = arith.addf %2, %4 : vector<8x128xf32>
    %cst_5 = arith.constant 0.000000e+00 : f32
    %6 = vector.broadcast %cst_5 : f32 to vector<8x128xf32>
    %7 = arith.maximumf %5, %6 : vector<8x128xf32>
    %8 = arith.truncf %7 : vector<8x128xf32> to vector<8x128xbf16>
    %c0_6 = arith.constant 0 : index
    %c0_7 = arith.constant 0 : index
    %9 = vector.load %arg4[%c0_6, %c0_7] : memref<128x128xbf16, #tpu.memory_space<vmem>>, vector<128x128xbf16>
    %cst_8 = arith.constant dense<0.000000e+00> : vector<8x128xf32>
    %10 = tpu.matmul %8, %9, %cst_8 {dimension_numbers = #tpu.dot_dimension_numbers<[1], [0], [0], [1], [0, 0, 1, 1], [], []>} : vector<8x128xbf16>, vector<128x128xbf16>, vector<8x128xf32> -> vector<8x128xf32>
    %c0_9 = arith.constant 0 : index
    %c0_10 = arith.constant 0 : index
    %11 = vector.load %arg5[%c0_9, %c0_10] : memref<1x128xf32, #tpu.memory_space<vmem>>, vector<1x128xf32>
    %12 = vector.broadcast %11 : vector<1x128xf32> to vector<8x128xf32>
    %13 = arith.addf %10, %12 : vector<8x128xf32>
    %cst_11 = arith.constant 0.000000e+00 : f32
    %14 = vector.broadcast %cst_11 : f32 to vector<8x128xf32>
    %15 = arith.maximumf %13, %14 : vector<8x128xf32>
    %16 = arith.truncf %15 : vector<8x128xf32> to vector<8x128xbf16>
    %c0_12 = arith.constant 0 : index
    %c0_13 = arith.constant 0 : index
    %17 = vector.load %arg6[%c0_12, %c0_13] : memref<128x256xbf16, #tpu.memory_space<vmem>>, vector<128x256xbf16>
    %cst_14 = arith.constant dense<0.000000e+00> : vector<8x256xf32>
    %18 = tpu.matmul %16, %17, %cst_14 {dimension_numbers = #tpu.dot_dimension_numbers<[1], [0], [0], [1], [0, 0, 1, 1], [], []>} : vector<8x128xbf16>, vector<128x256xbf16>, vector<8x256xf32> -> vector<8x256xf32>
    %c0_15 = arith.constant 0 : index
    %c0_16 = arith.constant 0 : index
    %19 = vector.load %arg7[%c0_15, %c0_16] : memref<1x256xf32, #tpu.memory_space<vmem>>, vector<1x256xf32>
    %20 = vector.broadcast %19 : vector<1x256xf32> to vector<8x256xf32>
    %21 = arith.addf %18, %20 : vector<8x256xf32>
    %22 = math.tanh %21 : vector<8x256xf32>
    %23 = arith.truncf %22 : vector<8x256xf32> to vector<8x256xbf16>
    %c0_17 = arith.constant 0 : index
    %c0_18 = arith.constant 0 : index
    %24 = vector.load %arg8[%c0_17, %c0_18] : memref<8x256xbf16, #tpu.memory_space<vmem>>, vector<8x256xbf16>
    tpu.vector_store %arg8[%c0_17, %c0_18], %23 {strides = array<i32>} : memref<8x256xbf16, #tpu.memory_space<vmem>>, vector<8x256xbf16>,
    return
  }
  func.func @transform_0(%arg0: i32) -> (i32, i32) {
    %c0_i32 = arith.constant 0 : i32
    %c0_i32_0 = arith.constant 0 : i32
    return %arg0, %c0_i32 : i32, i32
  }
  func.func @transform_1(%arg0: i32) -> (i32, i32) {
    %c0_i32 = arith.constant 0 : i32
    %c0_i32_0 = arith.constant 0 : i32
    %c0_i32_1 = arith.constant 0 : i32
    return %c0_i32, %c0_i32_0 : i32, i32
  }
  func.func @transform_2(%arg0: i32) -> (i32, i32) {
    %c0_i32 = arith.constant 0 : i32
    %c0_i32_0 = arith.constant 0 : i32
    %c0_i32_1 = arith.constant 0 : i32
    return %c0_i32, %c0_i32_0 : i32, i32
  }
  func.func @transform_3(%arg0: i32) -> (i32, i32) {
    %c0_i32 = arith.constant 0 : i32
    %c0_i32_0 = arith.constant 0 : i32
    %c0_i32_1 = arith.constant 0 : i32
    return %c0_i32, %c0_i32_0 : i32, i32
  }
  func.func @transform_4(%arg0: i32) -> (i32, i32) {
    %c0_i32 = arith.constant 0 : i32
    %c0_i32_0 = arith.constant 0 : i32
    %c0_i32_1 = arith.constant 0 : i32
    return %c0_i32, %c0_i32_0 : i32, i32
  }
  func.func @transform_5(%arg0: i32) -> (i32, i32) {
    %c0_i32 = arith.constant 0 : i32
    %c0_i32_0 = arith.constant 0 : i32
    %c0_i32_1 = arith.constant 0 : i32
    return %c0_i32, %c0_i32_0 : i32, i32
  }
  func.func @transform_6(%arg0: i32) -> (i32, i32) {
    %c0_i32 = arith.constant 0 : i32
    %c0_i32_0 = arith.constant 0 : i32
    %c0_i32_1 = arith.constant 0 : i32
    return %c0_i32, %c0_i32_0 : i32, i32
  }
  func.func @transform_7(%arg0: i32) -> (i32, i32) {
    %c0_i32 = arith.constant 0 : i32
    %c0_i32_0 = arith.constant 0 : i32
    return %arg0, %c0_i32 : i32, i32
  }
}

module attributes {stable_mosaic.version = 11 : i64} {
  func.func @_fused_mlp_kernel(%arg0: i32, %arg1: memref<8x32xbf16, #tpu.memory_space<vmem>>, %arg2: memref<32x128xbf16, #tpu.memory_space<vmem>>, %arg3: memref<1x128xf32, #tpu.memory_space<vmem>>, %arg4: memref<128x128xbf16, #tpu.memory_space<vmem>>, %arg5: memref<1x128xf32, #tpu.memory_space<vmem>>, %arg6: memref<128x256xbf16, #tpu.memory_space<vmem>>, %arg7: memref<1x256xf32, #tpu.memory_space<vmem>>, %arg8: memref<8x256xbf16, #tpu.memory_space<vmem>>) attributes {dimension_semantics = [#tpu.dimension_semantics<parallel>], iteration_bounds = array<i64: 1>, scalar_prefetch = 0 : i64, scratch_operands = 0 : i64, tpu.core_type = #tpu.core_type<tc>, window_params = [{transform_indices = @transform_0, window_bounds = array<i64: 8, 32>}, {pipeline_mode = #tpu.pipeline_mode<synchronous>, transform_indices = @transform_1, window_bounds = array<i64: 32, 128>}, {pipeline_mode = #tpu.pipeline_mode<synchronous>, transform_indices = @transform_2, window_bounds = array<i64: 1, 128>}, {pipeline_mode = #tpu.pipeline_mode<synchronous>, transform_indices = @transform_3, window_bounds = array<i64: 128, 128>}, {pipeline_mode = #tpu.pipeline_mode<synchronous>, transform_indices = @transform_4, window_bounds = array<i64: 1, 128>}, {pipeline_mode = #tpu.pipeline_mode<synchronous>, transform_indices = @transform_5, window_bounds = array<i64: 128, 256>}, {pipeline_mode = #tpu.pipeline_mode<synchronous>, transform_indices = @transform_6, window_bounds = array<i64: 1, 256>}, {transform_indices = @transform_7, window_bounds = array<i64: 8, 256>}]} {
    %c0 = arith.constant 0 : index
    %c0_0 = arith.constant 0 : index
    %0 = vector.load %arg1[%c0, %c0_0] : memref<8x32xbf16, #tpu.memory_space<vmem>>, vector<8x32xbf16>
    %c0_1 = arith.constant 0 : index
    %c0_2 = arith.constant 0 : index
    %1 = vector.load %arg2[%c0_1, %c0_2] : memref<32x128xbf16, #tpu.memory_space<vmem>>, vector<32x128xbf16>
    %cst = arith.constant dense<0.000000e+00> : vector<8x128xf32>
    %2 = tpu.matmul %0, %1, %cst {dimension_numbers = #tpu.dot_dimension_numbers<[1], [0], [0], [1], [0, 0, 1, 1], [], []>} : vector<8x32xbf16>, vector<32x128xbf16>, vector<8x128xf32> -> vector<8x128xf32>
    %c0_3 = arith.constant 0 : index
    %c0_4 = arith.constant 0 : index
    %3 = vector.load %arg3[%c0_3, %c0_4] : memref<1x128xf32, #tpu.memory_space<vmem>>, vector<1x128xf32>
    %4 = vector.broadcast %3 : vector<1x128xf32> to vector<8x128xf32>
    %5 = arith.addf %2, %4 : vector<8x128xf32>
    %cst_5 = arith.constant 0.000000e+00 : f32
    %6 = vector.broadcast %cst_5 : f32 to vector<8x128xf32>
    %7 = arith.maximumf %5, %6 : vector<8x128xf32>
    %8 = arith.truncf %7 : vector<8x128xf32> to vector<8x128xbf16>
    %c0_6 = arith.constant 0 : index
    %c0_7 = arith.constant 0 : index
    %9 = vector.load %arg4[%c0_6, %c0_7] : memref<128x128xbf16, #tpu.memory_space<vmem>>, vector<128x128xbf16>
    %cst_8 = arith.constant dense<0.000000e+00> : vector<8x128xf32>
    %10 = tpu.matmul %8, %9, %cst_8 {dimension_numbers = #tpu.dot_dimension_numbers<[1], [0], [0], [1], [0, 0, 1, 1], [], []>} : vector<8x128xbf16>, vector<128x128xbf16>, vector<8x128xf32> -> vector<8x128xf32>
    %c0_9 = arith.constant 0 : index
    %c0_10 = arith.constant 0 : index
    %11 = vector.load %arg5[%c0_9, %c0_10] : memref<1x128xf32, #tpu.memory_space<vmem>>, vector<1x128xf32>
    %12 = vector.broadcast %11 : vector<1x128xf32> to vector<8x128xf32>
    %13 = arith.addf %10, %12 : vector<8x128xf32>
    %cst_11 = arith.constant 0.000000e+00 : f32
    %14 = vector.broadcast %cst_11 : f32 to vector<8x128xf32>
    %15 = arith.maximumf %13, %14 : vector<8x128xf32>
    %16 = arith.truncf %15 : vector<8x128xf32> to vector<8x128xbf16>
    %c0_12 = arith.constant 0 : index
    %c0_13 = arith.constant 0 : index
    %17 = vector.load %arg6[%c0_12, %c0_13] : memref<128x256xbf16, #tpu.memory_space<vmem>>, vector<128x256xbf16>
    %cst_14 = arith.constant dense<0.000000e+00> : vector<8x256xf32>
    %18 = tpu.matmul %16, %17, %cst_14 {dimension_numbers = #tpu.dot_dimension_numbers<[1], [0], [0], [1], [0, 0, 1, 1], [], []>} : vector<8x128xbf16>, vector<128x256xbf16>, vector<8x256xf32> -> vector<8x256xf32>
    %c0_15 = arith.constant 0 : index
    %c0_16 = arith.constant 0 : index
    %19 = vector.load %arg7[%c0_15, %c0_16] : memref<1x256xf32, #tpu.memory_space<vmem>>, vector<1x256xf32>
    %20 = vector.broadcast %19 : vector<1x256xf32> to vector<8x256xf32>
    %21 = arith.addf %18, %20 : vector<8x256xf32>
    %22 = math.tanh %21 : vector<8x256xf32>
    %23 = arith.truncf %22 : vector<8x256xf32> to vector<8x256xbf16>
    %c0_17 = arith.constant 0 : index
    %c0_18 = arith.constant 0 : index
    %24 = vector.load %arg8[%c0_17, %c0_18] : memref<8x256xbf16, #tpu.memory_space<vmem>>, vector<8x256xbf16>
    tpu.vector_store %arg8[%c0_17, %c0_18], %23 {strides = array<i32>} : memref<8x256xbf16, #tpu.memory_space<vmem>>, vector<8x256xbf16>,
    return
  }
  func.func @transform_0(%arg0: i32) -> (i32, i32) {
    %c0_i32 = arith.constant 0 : i32
    %c0_i32_0 = arith.constant 0 : i32
    return %arg0, %c0_i32 : i32, i32
  }
  func.func @transform_1(%arg0: i32) -> (i32, i32) {
    %c0_i32 = arith.constant 0 : i32
    %c0_i32_0 = arith.constant 0 : i32
    %c0_i32_1 = arith.constant 0 : i32
    return %c0_i32, %c0_i32_0 : i32, i32
  }
  func.func @transform_2(%arg0: i32) -> (i32, i32) {
    %c0_i32 = arith.constant 0 : i32
    %c0_i32_0 = arith.constant 0 : i32
    %c0_i32_1 = arith.constant 0 : i32
    return %c0_i32, %c0_i32_0 : i32, i32
  }
  func.func @transform_3(%arg0: i32) -> (i32, i32) {
    %c0_i32 = arith.constant 0 : i32
    %c0_i32_0 = arith.constant 0 : i32
    %c0_i32_1 = arith.constant 0 : i32
    return %c0_i32, %c0_i32_0 : i32, i32
  }
  func.func @transform_4(%arg0: i32) -> (i32, i32) {
    %c0_i32 = arith.constant 0 : i32
    %c0_i32_0 = arith.constant 0 : i32
    %c0_i32_1 = arith.constant 0 : i32
    return %c0_i32, %c0_i32_0 : i32, i32
  }
  func.func @transform_5(%arg0: i32) -> (i32, i32) {
    %c0_i32 = arith.constant 0 : i32
    %c0_i32_0 = arith.constant 0 : i32
    %c0_i32_1 = arith.constant 0 : i32
    return %c0_i32, %c0_i32_0 : i32, i32
  }
  func.func @transform_6(%arg0: i32) -> (i32, i32) {
    %c0_i32 = arith.constant 0 : i32
    %c0_i32_0 = arith.constant 0 : i32
    %c0_i32_1 = arith.constant 0 : i32
    return %c0_i32, %c0_i32_0 : i32, i32
  }
  func.func @transform_7(%arg0: i32) -> (i32, i32) {
    %c0_i32 = arith.constant 0 : i32
    %c0_i32_0 = arith.constant 0 : i32
    return %arg0, %c0_i32 : i32, i32
  }
}

</mosaic_0001>

<llo_original>
// kernel: tpu_custom_call.1
$region0: #{tpu_custom_call.1}
  #allocation0 [shape = 'u32[]', space=smem, size = 0x4, offset = 0x4, fixed_abs, tag = 'smem constant byte address 0x4 - core index']
  #allocation1 [shape = 'u32[144,128]{1,0:T(1,128)}', space=vmem, size = 0x12000, scoped, tag = 'internal scratch']
  %s0 = inlined_call_operand.hbm [shape: bf16[8,32], index: 0, kind: input, shape index: {}]
  %s1 = inlined_call_operand.hbm [shape: bf16[32,128], index: 1, kind: input, shape index: {}]
  %s2 = inlined_call_operand.vmem [shape: f32[1,128], index: 2, kind: input, shape index: {}]
  %s3 = inlined_call_operand.hbm [shape: bf16[128,128], index: 3, kind: input, shape index: {}]
  %s4 = inlined_call_operand.vmem [shape: f32[1,128], index: 4, kind: input, shape index: {}]
  %s5 = inlined_call_operand.hbm [shape: bf16[128,256], index: 5, kind: input, shape index: {}]
  %s6 = inlined_call_operand.vmem [shape: f32[1,256], index: 6, kind: input, shape index: {}]
  %s7 = inlined_call_operand.hbm [shape: bf16[8,256], index: 7, kind: output, shape index: {}]
  %s8 = sld [smem:[#allocation0]]
  $region54: #{tpu_custom_call.1} parent=0
    _
  %s10 = ssub.s32 1, %s8
  %s11 = scalar_select 0, %s10, %s8
  $region1: #{tpu_custom_call.1} parent=0
    #allocation2 [shape = 'u8[2048]{0}', space=vmem, size = 0x800, scoped, tag = 'input window, operand 0, single buffered']
    #allocation3 [shape = 's32[1]{0}', space=sflag, size = 0x4, scoped, tag = 'scoped memory for tpu_custom_call.1']
    #allocation4 [shape = 's32[1]{0}', space=sflag, size = 0x4, scoped, tag = 'scoped memory for tpu_custom_call.1']
    #allocation5 [shape = 'u8[8192]{0}', space=vmem, size = 0x2000, scoped, tag = 'input window, operand 1, single buffered']
    #allocation6 [shape = 's32[1]{0}', space=sflag, size = 0x4, scoped, tag = 'scoped memory for tpu_custom_call.1']
    #allocation7 [shape = 'u8[32768]{0}', space=vmem, size = 0x8000, scoped, tag = 'input window, operand 3, single buffered']
    #allocation8 [shape = 'u8[65536]{0}', space=vmem, size = 0x10000, scoped, tag = 'input window, operand 5, single buffered']
    #allocation9 [shape = 's32[1]{0}', space=sflag, size = 0x4, scoped, tag = 'scoped memory for tpu_custom_call.1']
    #allocation10 [shape = 'u8[4096]{0}', space=vmem, size = 0x1000, scoped, tag = 'output window, operand 0, single buffered']
    %12 = vsyncpa [#allocation3], 0
    %13 = vsyncpa [#allocation6], 0
    %14 = vsyncpa [#allocation9], 0
    %15 = vsyncpa [#allocation4], 0
    // Predicated region
    $region2: #{tpu_custom_call.1} parent=1 // pred_check
      _
    $region3: #{tpu_custom_call.1} parent=1 // pred_check_branch
      %17 = sbr.rel (0) target = $region5
    $region4: #{tpu_custom_call.1} parent=1 // pred_region
      %s19 = ssub.s32 64, 64
      %20 = vsyncadd [#allocation3], %s19
      %s22 = sshll.u32 [#allocation2], 4
      %s23 = int_to_ptr.vmem [resolvable:$true] %s22
      %25 = dma.hbm_to_vmem [thread:$0]  %s0, 64, %s23, [#allocation3]
    $region5: #{tpu_custom_call.1} parent=1 // pred_fallthru
      _
    // Predicated region
    $region6: #{tpu_custom_call.1} parent=1 // pred_check
      _
    $region7: #{tpu_custom_call.1} parent=1 // pred_check_branch
      %27 = sbr.rel (0) target = $region9
    $region8: #{tpu_custom_call.1} parent=1 // pred_region
      %s29 = ssub.s32 256, 256
      %30 = vsyncadd [#allocation6], %s29
      %s31 = sshll.u32 [#allocation5], 4
      %s32 = int_to_ptr.vmem [resolvable:$true] %s31
      %37 = dma.hbm_to_vmem [thread:$0]  %s1, 256, %s32, [#allocation6], 64, 64, 4
    $region9: #{tpu_custom_call.1} parent=1 // pred_fallthru
      _
    // Predicated region
    $region10: #{tpu_custom_call.1} parent=1 // pred_check
      _
    $region11: #{tpu_custom_call.1} parent=1 // pred_check_branch
      %39 = sbr.rel (0) target = $region13
    $region12: #{tpu_custom_call.1} parent=1 // pred_region
      _
    $region13: #{tpu_custom_call.1} parent=1 // pred_fallthru
      _
    // Predicated region
    $region14: #{tpu_custom_call.1} parent=1 // pred_check
      _
    $region15: #{tpu_custom_call.1} parent=1 // pred_check_branch
      %41 = sbr.rel (0) target = $region17
    $region16: #{tpu_custom_call.1} parent=1 // pred_region
      %s43 = ssub.s32 1024, 1024
      %44 = vsyncadd [#allocation6], %s43
      %s45 = sshll.u32 [#allocation7], 4
      %s46 = int_to_ptr.vmem [resolvable:$true] %s45
      %51 = dma.hbm_to_vmem [thread:$0]  %s3, 1024, %s46, [#allocation6], 64, 64, 4
    $region17: #{tpu_custom_call.1} parent=1 // pred_fallthru
      _
    // Predicated region
    $region18: #{tpu_custom_call.1} parent=1 // pred_check
      _
    $region19: #{tpu_custom_call.1} parent=1 // pred_check_branch
      %53 = sbr.rel (0) target = $region21
    $region20: #{tpu_custom_call.1} parent=1 // pred_region
      _
    $region21: #{tpu_custom_call.1} parent=1 // pred_fallthru
      _
    // Predicated region
    $region22: #{tpu_custom_call.1} parent=1 // pred_check
      _
    $region23: #{tpu_custom_call.1} parent=1 // pred_check_branch
      %55 = sbr.rel (0) target = $region25
    $region24: #{tpu_custom_call.1} parent=1 // pred_region
      %s57 = ssub.s32 2048, 2048
      %58 = vsyncadd [#allocation9], %s57
      %s59 = sshll.u32 [#allocation8], 4
      %s60 = int_to_ptr.vmem [resolvable:$true] %s59
      %65 = dma.hbm_to_vmem [thread:$0]  %s5, 2048, %s60, [#allocation9], 128, 128, 8
    $region25: #{tpu_custom_call.1} parent=1 // pred_fallthru
      _
    // Predicated region
    $region26: #{tpu_custom_call.1} parent=1 // pred_check
      _
    $region27: #{tpu_custom_call.1} parent=1 // pred_check_branch
      %67 = sbr.rel (0) target = $region29
    $region28: #{tpu_custom_call.1} parent=1 // pred_region
      _
    $region29: #{tpu_custom_call.1} parent=1 // pred_fallthru
      _
    // Predicated region
    $region30: #{tpu_custom_call.1} parent=1 // pred_check
      _
    $region31: #{tpu_custom_call.1} parent=1 // pred_check_branch
      %69 = sbr.rel (0) target = $region33
    $region32: #{tpu_custom_call.1} parent=1 // pred_region
      %70 = dma.done [#allocation3], 64
    $region33: #{tpu_custom_call.1} parent=1 // pred_fallthru
      _
    // Predicated region
    $region34: #{tpu_custom_call.1} parent=1 // pred_check
      _
    $region35: #{tpu_custom_call.1} parent=1 // pred_check_branch
      %72 = sbr.rel (0) target = $region37
    $region36: #{tpu_custom_call.1} parent=1 // pred_region
      %73 = dma.done [#allocation6], 256
    $region37: #{tpu_custom_call.1} parent=1 // pred_fallthru
      _
    // Predicated region
    $region38: #{tpu_custom_call.1} parent=1 // pred_check
      _
    $region39: #{tpu_custom_call.1} parent=1 // pred_check_branch
      %75 = sbr.rel (0) target = $region41
    $region40: #{tpu_custom_call.1} parent=1 // pred_region
      %76 = dma.done [#allocation6], 1024
    $region41: #{tpu_custom_call.1} parent=1 // pred_fallthru
      _
    // Predicated region
    $region42: #{tpu_custom_call.1} parent=1 // pred_check
      _
    $region43: #{tpu_custom_call.1} parent=1 // pred_check_branch
      %78 = sbr.rel (0) target = $region45
    $region44: #{tpu_custom_call.1} parent=1 // pred_region
      %79 = dma.done [#allocation9], 2048
    $region45: #{tpu_custom_call.1} parent=1 // pred_fallthru
      _
    %v81 = vld [vmem:[#allocation2] sm:$0xf]
    %v82 = vld [vmem:[#allocation5] sm:$0xf]
    %v83 = vld [vmem:[#allocation5 + $0x4] sm:$0xf]
    %v84 = vld [vmem:[#allocation5 + $0x8] sm:$0xf]
    %v85 = vld [vmem:[#allocation5 + $0xc] sm:$0xf]
    %v86 = vld [vmem:[%s2] sm:$0x1]
    %v88 = vlaneseq
    %v89 = vshrl.u32 %v88, 7
    %v90 = vsub.s32 0, %v89
    %v91 = vrot.slane %v86, %v90
    %v97 = vunpack.c.l.b16 %v82
    %v98 = vunpack.c.l.b16 %v83
    %v99 = vunpack.c.l.b16 %v84
    %v100 = vunpack.c.l.b16 %v85
    %v101 = vpack.c.b16 %v98, %v97
    %v102 = vpack.c.b16 %v100, %v99
    %vm105 = vcmask 261120
    %v107 = vsel %vm105, %v81, 0
    %109 = vmatprep.subr.bf16.mxu0 0
    %110 = vmatpush1.bf16.msra.mxu0 0
    %111 = vmatprep.subr.bf16.mxu0 0
    %112 = vmatpush1.bf16.msra.mxu0 0
    %113 = vmatprep.subr.bf16.mxu0 0
    %114 = vmatpush1.bf16.msra.mxu0 0
    %115 = vmatprep.subr.bf16.mxu0 0
    %116 = vmatpush1.bf16.msra.mxu0 0
    %117 = vmatprep.subr.bf16.mxu0 0
    %118 = vmatpush1.bf16.msra.mxu0 0
    %119 = vmatprep.subr.bf16.mxu0 0
    %120 = vmatpush1.bf16.msra.mxu0 0
    %121 = vmatprep.subr.bf16.mxu0 0
    %122 = vmatpush1.bf16.msra.mxu0 %v102
    %123 = vmatprep.subr.bf16.mxu0 0
    %124 = vmatpush1.bf16.msra.mxu0 %v101
    %125 = vmatprep.subr.bf16.mxu0 0
    %126 = vmatpush2.bf16.msra.mxu0 0
    %127 = vmatprep.subr.bf16.mxu0 0
    %128 = vmatpush2.bf16.msra.mxu0 0
    %129 = vmatprep.subr.bf16.mxu0 0
    %130 = vmatpush2.bf16.msra.mxu0 0
    %131 = vmatprep.subr.bf16.mxu0 0
    %132 = vmatpush2.bf16.msra.mxu0 0
    %133 = vmatprep.subr.bf16.mxu0 0
    %134 = vmatpush2.bf16.msra.mxu0 0
    %135 = vmatprep.subr.bf16.mxu0 0
    %136 = vmatpush2.bf16.msra.mxu0 0
    %137 = vmatprep.subr.bf16.mxu0 0
    %138 = vmatpush2.bf16.msra.mxu0 0
    %139 = vmatprep.subr.bf16.mxu0 0
    %140 = vmatpush2.bf16.msra.mxu0 0
    %141 = vmatprep.mubr.bf16.mxu0 0
    %142 = vmatmul.mubr.bf16.gmra.mxu0 %v107
    %v143 = vpop.f32.mrf.mxu0
    %v144 = vadd.f32 %v91, %v143
    %v145 = vpop.f32.mrf.mxu0
    %v146 = vpop.f32.mrf.mxu0
    %v147 = vpop.f32.mrf.mxu0
    %148 = vdwg.mxu0
    %v149 = vmax.f32 %v144, 0.0
    %v150 = vpack.c.bf16 %v149, %v149
    %v151 = vld [vmem:[#allocation7] sm:$0xf]
    %v152 = vld [vmem:[#allocation7 + $0x4] sm:$0xf]
    %v153 = vld [vmem:[#allocation7 + $0x8] sm:$0xf]
    %v154 = vld [vmem:[#allocation7 + $0xc] sm:$0xf]
    %v155 = vld [vmem:[#allocation7 + $0x10] sm:$0xf]
    %v156 = vld [vmem:[#allocation7 + $0x14] sm:$0xf]
    %v157 = vld [vmem:[#allocation7 + $0x18] sm:$0xf]
    %v158 = vld [vmem:[#allocation7 + $0x1c] sm:$0xf]
    %v159 = vld [vmem:[#allocation7 + $0x20] sm:$0xf]
    %v160 = vld [vmem:[#allocation7 + $0x24] sm:$0xf]
    %v161 = vld [vmem:[#allocation7 + $0x28] sm:$0xf]
    %v162 = vld [vmem:[#allocation7 + $0x2c] sm:$0xf]
    %v163 = vld [vmem:[#allocation7 + $0x30] sm:$0xf]
    %v164 = vld [vmem:[#allocation7 + $0x34] sm:$0xf]
    %v165 = vld [vmem:[#allocation7 + $0x38] sm:$0xf]
    %v166 = vld [vmem:[#allocation7 + $0x3c] sm:$0xf]
    %v167 = vld [vmem:[%s4] sm:$0x1]
    %v169 = vlaneseq
    %v170 = vshrl.u32 %v169, 7
    %v171 = vsub.s32 0, %v170
    %v172 = vrot.slane %v167, %v171
    %v190 = vunpack.c.l.b16 %v151
    %v191 = vunpack.c.l.b16 %v152
    %v192 = vunpack.c.l.b16 %v153
    %v193 = vunpack.c.l.b16 %v154
    %v194 = vunpack.c.l.b16 %v155
    %v195 = vunpack.c.l.b16 %v156
    %v196 = vunpack.c.l.b16 %v157
    %v197 = vunpack.c.l.b16 %v158
    %v198 = vunpack.c.l.b16 %v159
    %v199 = vunpack.c.l.b16 %v160
    %v200 = vunpack.c.l.b16 %v161
    %v201 = vunpack.c.l.b16 %v162
    %v202 = vunpack.c.l.b16 %v163
    %v203 = vunpack.c.l.b16 %v164
    %v204 = vunpack.c.l.b16 %v165
    %v205 = vunpack.c.l.b16 %v166
    %v206 = vpack.c.b16 %v191, %v190
    %v207 = vpack.c.b16 %v193, %v192
    %v208 = vpack.c.b16 %v195, %v194
    %v209 = vpack.c.b16 %v197, %v196
    %v210 = vpack.c.b16 %v199, %v198
    %v211 = vpack.c.b16 %v201, %v200
    %v212 = vpack.c.b16 %v203, %v202
    %v213 = vpack.c.b16 %v205, %v204
    %222 = vmatprep.subr.bf16.mxu0 0
    %223 = vmatpush1.bf16.msra.mxu0 %v213
    %224 = vmatprep.subr.bf16.mxu0 0
    %225 = vmatpush1.bf16.msra.mxu0 %v212
    %226 = vmatprep.subr.bf16.mxu0 0
    %227 = vmatpush1.bf16.msra.mxu0 %v211
    %228 = vmatprep.subr.bf16.mxu0 0
    %229 = vmatpush1.bf16.msra.mxu0 %v210
    %230 = vmatprep.subr.bf16.mxu0 0
    %231 = vmatpush1.bf16.msra.mxu0 %v209
    %232 = vmatprep.subr.bf16.mxu0 0
    %233 = vmatpush1.bf16.msra.mxu0 %v208
    %234 = vmatprep.subr.bf16.mxu0 0
    %235 = vmatpush1.bf16.msra.mxu0 %v207
    %236 = vmatprep.subr.bf16.mxu0 0
    %237 = vmatpush1.bf16.msra.mxu0 %v206
    %238 = vmatprep.subr.bf16.mxu0 0
    %239 = vmatpush2.bf16.msra.mxu0 0
    %240 = vmatprep.subr.bf16.mxu0 0
    %241 = vmatpush2.bf16.msra.mxu0 0
    %242 = vmatprep.subr.bf16.mxu0 0
    %243 = vmatpush2.bf16.msra.mxu0 0
    %244 = vmatprep.subr.bf16.mxu0 0
    %245 = vmatpush2.bf16.msra.mxu0 0
    %246 = vmatprep.subr.bf16.mxu0 0
    %247 = vmatpush2.bf16.msra.mxu0 0
    %248 = vmatprep.subr.bf16.mxu0 0
    %249 = vmatpush2.bf16.msra.mxu0 0
    %250 = vmatprep.subr.bf16.mxu0 0
    %251 = vmatpush2.bf16.msra.mxu0 0
    %252 = vmatprep.subr.bf16.mxu0 0
    %253 = vmatpush2.bf16.msra.mxu0 0
    %254 = vmatprep.mubr.bf16.mxu0 0
    %255 = vmatmul.mubr.bf16.gmra.mxu0 %v150
    %v256 = vpop.f32.mrf.mxu0
    %v257 = vadd.f32 %v172, %v256
    %v258 = vpop.f32.mrf.mxu0
    %v259 = vpop.f32.mrf.mxu0
    %v260 = vpop.f32.mrf.mxu0
    %261 = vdwg.mxu0
    %v262 = vmax.f32 %v257, 0.0
    %v263 = vpack.c.bf16 %v262, %v262
    %v264 = vld [vmem:[#allocation8] sm:$0xff]
    %v265 = vld [vmem:[#allocation8 + $0x8] sm:$0xff]
    %v266 = vld [vmem:[#allocation8 + $0x10] sm:$0xff]
    %v267 = vld [vmem:[#allocation8 + $0x18] sm:$0xff]
    %v268 = vld [vmem:[#allocation8 + $0x20] sm:$0xff]
    %v269 = vld [vmem:[#allocation8 + $0x28] sm:$0xff]
    %v270 = vld [vmem:[#allocation8 + $0x30] sm:$0xff]
    %v271 = vld [vmem:[#allocation8 + $0x38] sm:$0xff]
    %v272 = vld [vmem:[#allocation8 + $0x40] sm:$0xff]
    %v273 = vld [vmem:[#allocation8 + $0x48] sm:$0xff]
    %v274 = vld [vmem:[#allocation8 + $0x50] sm:$0xff]
    %v275 = vld [vmem:[#allocation8 + $0x58] sm:$0xff]
    %v276 = vld [vmem:[#allocation8 + $0x60] sm:$0xff]
    %v277 = vld [vmem:[#allocation8 + $0x68] sm:$0xff]
    %v278 = vld [vmem:[#allocation8 + $0x70] sm:$0xff]
    %v279 = vld [vmem:[#allocation8 + $0x78] sm:$0xff]
    %v280 = vld [vmem:[%s6] sm:$0x3]
    %v282 = vlaneseq
    %v283 = vshrl.u32 %v282, 7
    %v284 = vsub.s32 0, %v283
    %v285 = vrot.slane %v280, %v284
    %v286 = vlaneseq
    %v287 = vshrl.u32 %v286, 7
    %v288 = vsub.s32 1, %v287
    %v289 = vrot.slane %v280, %v288
    %v308 = vunpack.c.l.b16 %v264
    %v309 = vunpack.c.h.b16 %v264
    %v310 = vunpack.c.l.b16 %v265
    %v311 = vunpack.c.h.b16 %v265
    %v312 = vunpack.c.l.b16 %v266
    %v313 = vunpack.c.h.b16 %v266
    %v314 = vunpack.c.l.b16 %v267
    %v315 = vunpack.c.h.b16 %v267
    %v316 = vunpack.c.l.b16 %v268
    %v317 = vunpack.c.h.b16 %v268
    %v318 = vunpack.c.l.b16 %v269
    %v319 = vunpack.c.h.b16 %v269
    %v320 = vunpack.c.l.b16 %v270
    %v321 = vunpack.c.h.b16 %v270
    %v322 = vunpack.c.l.b16 %v271
    %v323 = vunpack.c.h.b16 %v271
    %v324 = vunpack.c.l.b16 %v272
    %v325 = vunpack.c.h.b16 %v272
    %v326 = vunpack.c.l.b16 %v273
    %v327 = vunpack.c.h.b16 %v273
    %v328 = vunpack.c.l.b16 %v274
    %v329 = vunpack.c.h.b16 %v274
    %v330 = vunpack.c.l.b16 %v275
    %v331 = vunpack.c.h.b16 %v275
    %v332 = vunpack.c.l.b16 %v276
    %v333 = vunpack.c.h.b16 %v276
    %v334 = vunpack.c.l.b16 %v277
    %v335 = vunpack.c.h.b16 %v277
    %v336 = vunpack.c.l.b16 %v278
    %v337 = vunpack.c.h.b16 %v278
    %v338 = vunpack.c.l.b16 %v279
    %v339 = vunpack.c.h.b16 %v279
    %v340 = vpack.c.b16 %v310, %v308
    %v341 = vpack.c.b16 %v311, %v309
    %v342 = vpack.c.b16 %v314, %v312
    %v343 = vpack.c.b16 %v315, %v313
    %v344 = vpack.c.b16 %v318, %v316
    %v345 = vpack.c.b16 %v319, %v317
    %v346 = vpack.c.b16 %v322, %v320
    %v347 = vpack.c.b16 %v323, %v321
    %v348 = vpack.c.b16 %v326, %v324
    %v349 = vpack.c.b16 %v327, %v325
    %v350 = vpack.c.b16 %v330, %v328
    %v351 = vpack.c.b16 %v331, %v329
    %v352 = vpack.c.b16 %v334, %v332
    %v353 = vpack.c.b16 %v335, %v333
    %v354 = vpack.c.b16 %v338, %v336
    %v355 = vpack.c.b16 %v339, %v337
    %372 = vmatprep.subr.bf16.mxu0 %v355
    %373 = vmatpush1.bf16.msra.mxu0 %v354
    %374 = vmatprep.subr.bf16.mxu0 %v353
    %375 = vmatpush1.bf16.msra.mxu0 %v352
    %376 = vmatprep.subr.bf16.mxu0 %v351
    %377 = vmatpush1.bf16.msra.mxu0 %v350
    %378 = vmatprep.subr.bf16.mxu0 %v349
    %379 = vmatpush1.bf16.msra.mxu0 %v348
    %380 = vmatprep.subr.bf16.mxu0 %v347
    %381 = vmatpush1.bf16.msra.mxu0 %v346
    %382 = vmatprep.subr.bf16.mxu0 %v345
    %383 = vmatpush1.bf16.msra.mxu0 %v344
    %384 = vmatprep.subr.bf16.mxu0 %v343
    %385 = vmatpush1.bf16.msra.mxu0 %v342
    %386 = vmatprep.subr.bf16.mxu0 %v341
    %387 = vmatpush1.bf16.msra.mxu0 %v340
    %388 = vmatprep.subr.bf16.mxu0 0
    %389 = vmatpush2.bf16.msra.mxu0 0
    %390 = vmatprep.subr.bf16.mxu0 0
    %391 = vmatpush2.bf16.msra.mxu0 0
    %392 = vmatprep.subr.bf16.mxu0 0
    %393 = vmatpush2.bf16.msra.mxu0 0
    %394 = vmatprep.subr.bf16.mxu0 0
    %395 = vmatpush2.bf16.msra.mxu0 0
    %396 = vmatprep.subr.bf16.mxu0 0
    %397 = vmatpush2.bf16.msra.mxu0 0
    %398 = vmatprep.subr.bf16.mxu0 0
    %399 = vmatpush2.bf16.msra.mxu0 0
    %400 = vmatprep.subr.bf16.mxu0 0
    %401 = vmatpush2.bf16.msra.mxu0 0
    %402 = vmatprep.subr.bf16.mxu0 0
    %403 = vmatpush2.bf16.msra.mxu0 0
    %404 = vmatprep.mubr.bf16.mxu0 0
    %405 = vmatmul.mubr.bf16.gmra.mxu0 %v263
    %v406 = vpop.f32.mrf.mxu0
    %v407 = vadd.f32 %v285, %v406
    %v408 = vpop.f32.mrf.mxu0
    %v409 = vadd.f32 %v289, %v408
    %v410 = vpop.f32.mrf.mxu0
    %v411 = vpop.f32.mrf.mxu0
    %412 = vdwg.mxu0
    %v413 = vtanh.pop %v407
    %v414 = vtanh.pop %v409
    %v415 = vpack.c.bf16 %v413, %v413
    %v416 = vpack.c.bf16 %v414, %v414
    %v419 = vunpack.c.l.b16 %v415
    %v420 = vunpack.c.l.b16 %v416
    %v421 = vpack.c.b16 %v420, %v419
    %423 = vst [vmem:[#allocation10] sm:$0xff] %v421
    // Predicated region
    $region46: #{tpu_custom_call.1} parent=1 // pred_check
      _
    $region47: #{tpu_custom_call.1} parent=1 // pred_check_branch
      %425 = sbr.rel (0) target = $region49
    $region48: #{tpu_custom_call.1} parent=1 // pred_region
      %s427 = ssub.s32 128, 128
      %428 = vsyncadd [#allocation4], %s427
      %s430 = sshll.u32 [#allocation10], 4
      %s431 = int_to_ptr.vmem [resolvable:$true] %s430
      %433 = dma.vmem_to_hbm [thread:$0]  %s431, 128, %s7, [#allocation4]
    $region49: #{tpu_custom_call.1} parent=1 // pred_fallthru
      _
    // Predicated region
    $region50: #{tpu_custom_call.1} parent=1 // pred_check
      _
    $region51: #{tpu_custom_call.1} parent=1 // pred_check_branch
      %435 = sbr.rel (0) target = $region53
    $region52: #{tpu_custom_call.1} parent=1 // pred_region
      %436 = dma.done [#allocation4], 128
    $region53: #{tpu_custom_call.1} parent=1 // pred_fallthru
      _
    %437 = vsyncpa [#allocation3], 1
    %438 = vsyncpa [#allocation6], 1
    %439 = vsyncpa [#allocation9], 1
    %440 = vsyncpa [#allocation4], 1

// kernel: tpu_custom_call.1
$region0: #{tpu_custom_call.1}
  #allocation0 [shape = 'u32[]', space=smem, size = 0x4, offset = 0x4, fixed_abs, tag = 'smem constant byte address 0x4 - core index']
  #allocation1 [shape = 'u32[144,128]{1,0:T(1,128)}', space=vmem, size = 0x12000, scoped, tag = 'internal scratch']
  %s0 = inlined_call_operand.hbm [shape: bf16[8,32], index: 0, kind: input, shape index: {}]
  %s1 = inlined_call_operand.hbm [shape: bf16[32,128], index: 1, kind: input, shape index: {}]
  %s2 = inlined_call_operand.vmem [shape: f32[1,128], index: 2, kind: input, shape index: {}]
  %s3 = inlined_call_operand.hbm [shape: bf16[128,128], index: 3, kind: input, shape index: {}]
  %s4 = inlined_call_operand.vmem [shape: f32[1,128], index: 4, kind: input, shape index: {}]
  %s5 = inlined_call_operand.hbm [shape: bf16[128,256], index: 5, kind: input, shape index: {}]
  %s6 = inlined_call_operand.vmem [shape: f32[1,256], index: 6, kind: input, shape index: {}]
  %s7 = inlined_call_operand.hbm [shape: bf16[8,256], index: 7, kind: output, shape index: {}]
  %s8 = sld [smem:[#allocation0]]
  $region54: #{tpu_custom_call.1} parent=0
    _
  %s10 = ssub.s32 1, %s8
  %s11 = scalar_select 0, %s10, %s8
  $region1: #{tpu_custom_call.1} parent=0
    #allocation2 [shape = 'u8[2048]{0}', space=vmem, size = 0x800, scoped, tag = 'input window, operand 0, single buffered']
    #allocation3 [shape = 's32[1]{0}', space=sflag, size = 0x4, scoped, tag = 'scoped memory for tpu_custom_call.1']
    #allocation4 [shape = 's32[1]{0}', space=sflag, size = 0x4, scoped, tag = 'scoped memory for tpu_custom_call.1']
    #allocation5 [shape = 'u8[8192]{0}', space=vmem, size = 0x2000, scoped, tag = 'input window, operand 1, single buffered']
    #allocation6 [shape = 's32[1]{0}', space=sflag, size = 0x4, scoped, tag = 'scoped memory for tpu_custom_call.1']
    #allocation7 [shape = 'u8[32768]{0}', space=vmem, size = 0x8000, scoped, tag = 'input window, operand 3, single buffered']
    #allocation8 [shape = 'u8[65536]{0}', space=vmem, size = 0x10000, scoped, tag = 'input window, operand 5, single buffered']
    #allocation9 [shape = 's32[1]{0}', space=sflag, size = 0x4, scoped, tag = 'scoped memory for tpu_custom_call.1']
    #allocation10 [shape = 'u8[4096]{0}', space=vmem, size = 0x1000, scoped, tag = 'output window, operand 0, single buffered']
    %12 = vsyncpa [#allocation3], 0
    %13 = vsyncpa [#allocation6], 0
    %14 = vsyncpa [#allocation9], 0
    %15 = vsyncpa [#allocation4], 0
    // Predicated region
    $region2: #{tpu_custom_call.1} parent=1 // pred_check
      _
    $region3: #{tpu_custom_call.1} parent=1 // pred_check_branch
      %17 = sbr.rel (0) target = $region5
    $region4: #{tpu_custom_call.1} parent=1 // pred_region
      %s19 = ssub.s32 64, 64
      %20 = vsyncadd [#allocation3], %s19
      %s22 = sshll.u32 [#allocation2], 4
      %s23 = int_to_ptr.vmem [resolvable:$true] %s22
      %25 = dma.hbm_to_vmem [thread:$0]  %s0, 64, %s23, [#allocation3]
    $region5: #{tpu_custom_call.1} parent=1 // pred_fallthru
      _
    // Predicated region
    $region6: #{tpu_custom_call.1} parent=1 // pred_check
      _
    $region7: #{tpu_custom_call.1} parent=1 // pred_check_branch
      %27 = sbr.rel (0) target = $region9
    $region8: #{tpu_custom_call.1} parent=1 // pred_region
      %s29 = ssub.s32 256, 256
      %30 = vsyncadd [#allocation6], %s29
      %s31 = sshll.u32 [#allocation5], 4
      %s32 = int_to_ptr.vmem [resolvable:$true] %s31
      %37 = dma.hbm_to_vmem [thread:$0]  %s1, 256, %s32, [#allocation6], 64, 64, 4
    $region9: #{tpu_custom_call.1} parent=1 // pred_fallthru
      _
    // Predicated region
    $region10: #{tpu_custom_call.1} parent=1 // pred_check
      _
    $region11: #{tpu_custom_call.1} parent=1 // pred_check_branch
      %39 = sbr.rel (0) target = $region13
    $region12: #{tpu_custom_call.1} parent=1 // pred_region
      _
    $region13: #{tpu_custom_call.1} parent=1 // pred_fallthru
      _
    // Predicated region
    $region14: #{tpu_custom_call.1} parent=1 // pred_check
      _
    $region15: #{tpu_custom_call.1} parent=1 // pred_check_branch
      %41 = sbr.rel (0) target = $region17
    $region16: #{tpu_custom_call.1} parent=1 // pred_region
      %s43 = ssub.s32 1024, 1024
      %44 = vsyncadd [#allocation6], %s43
      %s45 = sshll.u32 [#allocation7], 4
      %s46 = int_to_ptr.vmem [resolvable:$true] %s45
      %51 = dma.hbm_to_vmem [thread:$0]  %s3, 1024, %s46, [#allocation6], 64, 64, 4
    $region17: #{tpu_custom_call.1} parent=1 // pred_fallthru
      _
    // Predicated region
    $region18: #{tpu_custom_call.1} parent=1 // pred_check
      _
    $region19: #{tpu_custom_call.1} parent=1 // pred_check_branch
      %53 = sbr.rel (0) target = $region21
    $region20: #{tpu_custom_call.1} parent=1 // pred_region
      _
    $region21: #{tpu_custom_call.1} parent=1 // pred_fallthru
      _
    // Predicated region
    $region22: #{tpu_custom_call.1} parent=1 // pred_check
      _
    $region23: #{tpu_custom_call.1} parent=1 // pred_check_branch
      %55 = sbr.rel (0) target = $region25
    $region24: #{tpu_custom_call.1} parent=1 // pred_region
      %s57 = ssub.s32 2048, 2048
      %58 = vsyncadd [#allocation9], %s57
      %s59 = sshll.u32 [#allocation8], 4
      %s60 = int_to_ptr.vmem [resolvable:$true] %s59
      %65 = dma.hbm_to_vmem [thread:$0]  %s5, 2048, %s60, [#allocation9], 128, 128, 8
    $region25: #{tpu_custom_call.1} parent=1 // pred_fallthru
      _
    // Predicated region
    $region26: #{tpu_custom_call.1} parent=1 // pred_check
      _
    $region27: #{tpu_custom_call.1} parent=1 // pred_check_branch
      %67 = sbr.rel (0) target = $region29
    $region28: #{tpu_custom_call.1} parent=1 // pred_region
      _
    $region29: #{tpu_custom_call.1} parent=1 // pred_fallthru
      _
    // Predicated region
    $region30: #{tpu_custom_call.1} parent=1 // pred_check
      _
    $region31: #{tpu_custom_call.1} parent=1 // pred_check_branch
      %69 = sbr.rel (0) target = $region33
    $region32: #{tpu_custom_call.1} parent=1 // pred_region
      %70 = dma.done [#allocation3], 64
    $region33: #{tpu_custom_call.1} parent=1 // pred_fallthru
      _
    // Predicated region
    $region34: #{tpu_custom_call.1} parent=1 // pred_check
      _
    $region35: #{tpu_custom_call.1} parent=1 // pred_check_branch
      %72 = sbr.rel (0) target = $region37
    $region36: #{tpu_custom_call.1} parent=1 // pred_region
      %73 = dma.done [#allocation6], 256
    $region37: #{tpu_custom_call.1} parent=1 // pred_fallthru
      _
    // Predicated region
    $region38: #{tpu_custom_call.1} parent=1 // pred_check
      _
    $region39: #{tpu_custom_call.1} parent=1 // pred_check_branch
      %75 = sbr.rel (0) target = $region41
    $region40: #{tpu_custom_call.1} parent=1 // pred_region
      %76 = dma.done [#allocation6], 1024
    $region41: #{tpu_custom_call.1} parent=1 // pred_fallthru
      _
    // Predicated region
    $region42: #{tpu_custom_call.1} parent=1 // pred_check
      _
    $region43: #{tpu_custom_call.1} parent=1 // pred_check_branch
      %78 = sbr.rel (0) target = $region45
    $region44: #{tpu_custom_call.1} parent=1 // pred_region
      %79 = dma.done [#allocation9], 2048
    $region45: #{tpu_custom_call.1} parent=1 // pred_fallthru
      _
    %v81 = vld [vmem:[#allocation2] sm:$0xf]
    %v82 = vld [vmem:[#allocation5] sm:$0xf]
    %v83 = vld [vmem:[#allocation5 + $0x4] sm:$0xf]
    %v84 = vld [vmem:[#allocation5 + $0x8] sm:$0xf]
    %v85 = vld [vmem:[#allocation5 + $0xc] sm:$0xf]
    %v86 = vld [vmem:[%s2] sm:$0x1]
    %v88 = vlaneseq
    %v89 = vshrl.u32 %v88, 7
    %v90 = vsub.s32 0, %v89
    %v91 = vrot.slane %v86, %v90
    %v97 = vunpack.c.l.b16 %v82
    %v98 = vunpack.c.l.b16 %v83
    %v99 = vunpack.c.l.b16 %v84
    %v100 = vunpack.c.l.b16 %v85
    %v101 = vpack.c.b16 %v98, %v97
    %v102 = vpack.c.b16 %v100, %v99
    %vm105 = vcmask 261120
    %v107 = vsel %vm105, %v81, 0
    %109 = vmatprep.subr.bf16.mxu0 0
    %110 = vmatpush1.bf16.msra.mxu0 0
    %111 = vmatprep.subr.bf16.mxu0 0
    %112 = vmatpush1.bf16.msra.mxu0 0
    %113 = vmatprep.subr.bf16.mxu0 0
    %114 = vmatpush1.bf16.msra.mxu0 0
    %115 = vmatprep.subr.bf16.mxu0 0
    %116 = vmatpush1.bf16.msra.mxu0 0
    %117 = vmatprep.subr.bf16.mxu0 0
    %118 = vmatpush1.bf16.msra.mxu0 0
    %119 = vmatprep.subr.bf16.mxu0 0
    %120 = vmatpush1.bf16.msra.mxu0 0
    %121 = vmatprep.subr.bf16.mxu0 0
    %122 = vmatpush1.bf16.msra.mxu0 %v102
    %123 = vmatprep.subr.bf16.mxu0 0
    %124 = vmatpush1.bf16.msra.mxu0 %v101
    %125 = vmatprep.subr.bf16.mxu0 0
    %126 = vmatpush2.bf16.msra.mxu0 0
    %127 = vmatprep.subr.bf16.mxu0 0
    %128 = vmatpush2.bf16.msra.mxu0 0
    %129 = vmatprep.subr.bf16.mxu0 0
    %130 = vmatpush2.bf16.msra.mxu0 0
    %131 = vmatprep.subr.bf16.mxu0 0
    %132 = vmatpush2.bf16.msra.mxu0 0
    %133 = vmatprep.subr.bf16.mxu0 0
    %134 = vmatpush2.bf16.msra.mxu0 0
    %135 = vmatprep.subr.bf16.mxu0 0
    %136 = vmatpush2.bf16.msra.mxu0 0
    %137 = vmatprep.subr.bf16.mxu0 0
    %138 = vmatpush2.bf16.msra.mxu0 0
    %139 = vmatprep.subr.bf16.mxu0 0
    %140 = vmatpush2.bf16.msra.mxu0 0
    %141 = vmatprep.mubr.bf16.mxu0 0
    %142 = vmatmul.mubr.bf16.gmra.mxu0 %v107
    %v143 = vpop.f32.mrf.mxu0
    %v144 = vadd.f32 %v91, %v143
    %v145 = vpop.f32.mrf.mxu0
    %v146 = vpop.f32.mrf.mxu0
    %v147 = vpop.f32.mrf.mxu0
    %148 = vdwg.mxu0
    %v149 = vmax.f32 %v144, 0.0
    %v150 = vpack.c.bf16 %v149, %v149
    %v151 = vld [vmem:[#allocation7] sm:$0xf]
    %v152 = vld [vmem:[#allocation7 + $0x4] sm:$0xf]
    %v153 = vld [vmem:[#allocation7 + $0x8] sm:$0xf]
    %v154 = vld [vmem:[#allocation7 + $0xc] sm:$0xf]
    %v155 = vld [vmem:[#allocation7 + $0x10] sm:$0xf]
    %v156 = vld [vmem:[#allocation7 + $0x14] sm:$0xf]
    %v157 = vld [vmem:[#allocation7 + $0x18] sm:$0xf]
    %v158 = vld [vmem:[#allocation7 + $0x1c] sm:$0xf]
    %v159 = vld [vmem:[#allocation7 + $0x20] sm:$0xf]
    %v160 = vld [vmem:[#allocation7 + $0x24] sm:$0xf]
    %v161 = vld [vmem:[#allocation7 + $0x28] sm:$0xf]
    %v162 = vld [vmem:[#allocation7 + $0x2c] sm:$0xf]
    %v163 = vld [vmem:[#allocation7 + $0x30] sm:$0xf]
    %v164 = vld [vmem:[#allocation7 + $0x34] sm:$0xf]
    %v165 = vld [vmem:[#allocation7 + $0x38] sm:$0xf]
    %v166 = vld [vmem:[#allocation7 + $0x3c] sm:$0xf]
    %v167 = vld [vmem:[%s4] sm:$0x1]
    %v169 = vlaneseq
    %v170 = vshrl.u32 %v169, 7
    %v171 = vsub.s32 0, %v170
    %v172 = vrot.slane %v167, %v171
    %v190 = vunpack.c.l.b16 %v151
    %v191 = vunpack.c.l.b16 %v152
    %v192 = vunpack.c.l.b16 %v153
    %v193 = vunpack.c.l.b16 %v154
    %v194 = vunpack.c.l.b16 %v155
    %v195 = vunpack.c.l.b16 %v156
    %v196 = vunpack.c.l.b16 %v157
    %v197 = vunpack.c.l.b16 %v158
    %v198 = vunpack.c.l.b16 %v159
    %v199 = vunpack.c.l.b16 %v160
    %v200 = vunpack.c.l.b16 %v161
    %v201 = vunpack.c.l.b16 %v162
    %v202 = vunpack.c.l.b16 %v163
    %v203 = vunpack.c.l.b16 %v164
    %v204 = vunpack.c.l.b16 %v165
    %v205 = vunpack.c.l.b16 %v166
    %v206 = vpack.c.b16 %v191, %v190
    %v207 = vpack.c.b16 %v193, %v192
    %v208 = vpack.c.b16 %v195, %v194
    %v209 = vpack.c.b16 %v197, %v196
    %v210 = vpack.c.b16 %v199, %v198
    %v211 = vpack.c.b16 %v201, %v200
    %v212 = vpack.c.b16 %v203, %v202
    %v213 = vpack.c.b16 %v205, %v204
    %222 = vmatprep.subr.bf16.mxu0 0
    %223 = vmatpush1.bf16.msra.mxu0 %v213
    %224 = vmatprep.subr.bf16.mxu0 0
    %225 = vmatpush1.bf16.msra.mxu0 %v212
    %226 = vmatprep.subr.bf16.mxu0 0
    %227 = vmatpush1.bf16.msra.mxu0 %v211
    %228 = vmatprep.subr.bf16.mxu0 0
    %229 = vmatpush1.bf16.msra.mxu0 %v210
    %230 = vmatprep.subr.bf16.mxu0 0
    %231 = vmatpush1.bf16.msra.mxu0 %v209
    %232 = vmatprep.subr.bf16.mxu0 0
    %233 = vmatpush1.bf16.msra.mxu0 %v208
    %234 = vmatprep.subr.bf16.mxu0 0
    %235 = vmatpush1.bf16.msra.mxu0 %v207
    %236 = vmatprep.subr.bf16.mxu0 0
    %237 = vmatpush1.bf16.msra.mxu0 %v206
    %238 = vmatprep.subr.bf16.mxu0 0
    %239 = vmatpush2.bf16.msra.mxu0 0
    %240 = vmatprep.subr.bf16.mxu0 0
    %241 = vmatpush2.bf16.msra.mxu0 0
    %242 = vmatprep.subr.bf16.mxu0 0
    %243 = vmatpush2.bf16.msra.mxu0 0
    %244 = vmatprep.subr.bf16.mxu0 0
    %245 = vmatpush2.bf16.msra.mxu0 0
    %246 = vmatprep.subr.bf16.mxu0 0
    %247 = vmatpush2.bf16.msra.mxu0 0
    %248 = vmatprep.subr.bf16.mxu0 0
    %249 = vmatpush2.bf16.msra.mxu0 0
    %250 = vmatprep.subr.bf16.mxu0 0
    %251 = vmatpush2.bf16.msra.mxu0 0
    %252 = vmatprep.subr.bf16.mxu0 0
    %253 = vmatpush2.bf16.msra.mxu0 0
    %254 = vmatprep.mubr.bf16.mxu0 0
    %255 = vmatmul.mubr.bf16.gmra.mxu0 %v150
    %v256 = vpop.f32.mrf.mxu0
    %v257 = vadd.f32 %v172, %v256
    %v258 = vpop.f32.mrf.mxu0
    %v259 = vpop.f32.mrf.mxu0
    %v260 = vpop.f32.mrf.mxu0
    %261 = vdwg.mxu0
    %v262 = vmax.f32 %v257, 0.0
    %v263 = vpack.c.bf16 %v262, %v262
    %v264 = vld [vmem:[#allocation8] sm:$0xff]
    %v265 = vld [vmem:[#allocation8 + $0x8] sm:$0xff]
    %v266 = vld [vmem:[#allocation8 + $0x10] sm:$0xff]
    %v267 = vld [vmem:[#allocation8 + $0x18] sm:$0xff]
    %v268 = vld [vmem:[#allocation8 + $0x20] sm:$0xff]
    %v269 = vld [vmem:[#allocation8 + $0x28] sm:$0xff]
    %v270 = vld [vmem:[#allocation8 + $0x30] sm:$0xff]
    %v271 = vld [vmem:[#allocation8 + $0x38] sm:$0xff]
    %v272 = vld [vmem:[#allocation8 + $0x40] sm:$0xff]
    %v273 = vld [vmem:[#allocation8 + $0x48] sm:$0xff]
    %v274 = vld [vmem:[#allocation8 + $0x50] sm:$0xff]
    %v275 = vld [vmem:[#allocation8 + $0x58] sm:$0xff]
    %v276 = vld [vmem:[#allocation8 + $0x60] sm:$0xff]
    %v277 = vld [vmem:[#allocation8 + $0x68] sm:$0xff]
    %v278 = vld [vmem:[#allocation8 + $0x70] sm:$0xff]
    %v279 = vld [vmem:[#allocation8 + $0x78] sm:$0xff]
    %v280 = vld [vmem:[%s6] sm:$0x3]
    %v282 = vlaneseq
    %v283 = vshrl.u32 %v282, 7
    %v284 = vsub.s32 0, %v283
    %v285 = vrot.slane %v280, %v284
    %v286 = vlaneseq
    %v287 = vshrl.u32 %v286, 7
    %v288 = vsub.s32 1, %v287
    %v289 = vrot.slane %v280, %v288
    %v308 = vunpack.c.l.b16 %v264
    %v309 = vunpack.c.h.b16 %v264
    %v310 = vunpack.c.l.b16 %v265
    %v311 = vunpack.c.h.b16 %v265
    %v312 = vunpack.c.l.b16 %v266
    %v313 = vunpack.c.h.b16 %v266
    %v314 = vunpack.c.l.b16 %v267
    %v315 = vunpack.c.h.b16 %v267
    %v316 = vunpack.c.l.b16 %v268
    %v317 = vunpack.c.h.b16 %v268
    %v318 = vunpack.c.l.b16 %v269
    %v319 = vunpack.c.h.b16 %v269
    %v320 = vunpack.c.l.b16 %v270
    %v321 = vunpack.c.h.b16 %v270
    %v322 = vunpack.c.l.b16 %v271
    %v323 = vunpack.c.h.b16 %v271
    %v324 = vunpack.c.l.b16 %v272
    %v325 = vunpack.c.h.b16 %v272
    %v326 = vunpack.c.l.b16 %v273
    %v327 = vunpack.c.h.b16 %v273
    %v328 = vunpack.c.l.b16 %v274
    %v329 = vunpack.c.h.b16 %v274
    %v330 = vunpack.c.l.b16 %v275
    %v331 = vunpack.c.h.b16 %v275
    %v332 = vunpack.c.l.b16 %v276
    %v333 = vunpack.c.h.b16 %v276
    %v334 = vunpack.c.l.b16 %v277
    %v335 = vunpack.c.h.b16 %v277
    %v336 = vunpack.c.l.b16 %v278
    %v337 = vunpack.c.h.b16 %v278
    %v338 = vunpack.c.l.b16 %v279
    %v339 = vunpack.c.h.b16 %v279
    %v340 = vpack.c.b16 %v310, %v308
    %v341 = vpack.c.b16 %v311, %v309
    %v342 = vpack.c.b16 %v314, %v312
    %v343 = vpack.c.b16 %v315, %v313
    %v344 = vpack.c.b16 %v318, %v316
    %v345 = vpack.c.b16 %v319, %v317
    %v346 = vpack.c.b16 %v322, %v320
    %v347 = vpack.c.b16 %v323, %v321
    %v348 = vpack.c.b16 %v326, %v324
    %v349 = vpack.c.b16 %v327, %v325
    %v350 = vpack.c.b16 %v330, %v328
    %v351 = vpack.c.b16 %v331, %v329
    %v352 = vpack.c.b16 %v334, %v332
    %v353 = vpack.c.b16 %v335, %v333
    %v354 = vpack.c.b16 %v338, %v336
    %v355 = vpack.c.b16 %v339, %v337
    %372 = vmatprep.subr.bf16.mxu0 %v355
    %373 = vmatpush1.bf16.msra.mxu0 %v354
    %374 = vmatprep.subr.bf16.mxu0 %v353
    %375 = vmatpush1.bf16.msra.mxu0 %v352
    %376 = vmatprep.subr.bf16.mxu0 %v351
    %377 = vmatpush1.bf16.msra.mxu0 %v350
    %378 = vmatprep.subr.bf16.mxu0 %v349
    %379 = vmatpush1.bf16.msra.mxu0 %v348
    %380 = vmatprep.subr.bf16.mxu0 %v347
    %381 = vmatpush1.bf16.msra.mxu0 %v346
    %382 = vmatprep.subr.bf16.mxu0 %v345
    %383 = vmatpush1.bf16.msra.mxu0 %v344
    %384 = vmatprep.subr.bf16.mxu0 %v343
    %385 = vmatpush1.bf16.msra.mxu0 %v342
    %386 = vmatprep.subr.bf16.mxu0 %v341
    %387 = vmatpush1.bf16.msra.mxu0 %v340
    %388 = vmatprep.subr.bf16.mxu0 0
    %389 = vmatpush2.bf16.msra.mxu0 0
    %390 = vmatprep.subr.bf16.mxu0 0
    %391 = vmatpush2.bf16.msra.mxu0 0
    %392 = vmatprep.subr.bf16.mxu0 0
    %393 = vmatpush2.bf16.msra.mxu0 0
    %394 = vmatprep.subr.bf16.mxu0 0
    %395 = vmatpush2.bf16.msra.mxu0 0
    %396 = vmatprep.subr.bf16.mxu0 0
    %397 = vmatpush2.bf16.msra.mxu0 0
    %398 = vmatprep.subr.bf16.mxu0 0
    %399 = vmatpush2.bf16.msra.mxu0 0
    %400 = vmatprep.subr.bf16.mxu0 0
    %401 = vmatpush2.bf16.msra.mxu0 0
    %402 = vmatprep.subr.bf16.mxu0 0
    %403 = vmatpush2.bf16.msra.mxu0 0
    %404 = vmatprep.mubr.bf16.mxu0 0
    %405 = vmatmul.mubr.bf16.gmra.mxu0 %v263
    %v406 = vpop.f32.mrf.mxu0
    %v407 = vadd.f32 %v285, %v406
    %v408 = vpop.f32.mrf.mxu0
    %v409 = vadd.f32 %v289, %v408
    %v410 = vpop.f32.mrf.mxu0
    %v411 = vpop.f32.mrf.mxu0
    %412 = vdwg.mxu0
    %v413 = vtanh.pop %v407
    %v414 = vtanh.pop %v409
    %v415 = vpack.c.bf16 %v413, %v413
    %v416 = vpack.c.bf16 %v414, %v414
    %v419 = vunpack.c.l.b16 %v415
    %v420 = vunpack.c.l.b16 %v416
    %v421 = vpack.c.b16 %v420, %v419
    %423 = vst [vmem:[#allocation10] sm:$0xff] %v421
    // Predicated region
    $region46: #{tpu_custom_call.1} parent=1 // pred_check
      _
    $region47: #{tpu_custom_call.1} parent=1 // pred_check_branch
      %425 = sbr.rel (0) target = $region49
    $region48: #{tpu_custom_call.1} parent=1 // pred_region
      %s427 = ssub.s32 128, 128
      %428 = vsyncadd [#allocation4], %s427
      %s430 = sshll.u32 [#allocation10], 4
      %s431 = int_to_ptr.vmem [resolvable:$true] %s430
      %433 = dma.vmem_to_hbm [thread:$0]  %s431, 128, %s7, [#allocation4]
    $region49: #{tpu_custom_call.1} parent=1 // pred_fallthru
      _
    // Predicated region
    $region50: #{tpu_custom_call.1} parent=1 // pred_check
      _
    $region51: #{tpu_custom_call.1} parent=1 // pred_check_branch
      %435 = sbr.rel (0) target = $region53
    $region52: #{tpu_custom_call.1} parent=1 // pred_region
      %436 = dma.done [#allocation4], 128
    $region53: #{tpu_custom_call.1} parent=1 // pred_fallthru
      _
    %437 = vsyncpa [#allocation3], 1
    %438 = vsyncpa [#allocation6], 1
    %439 = vsyncpa [#allocation9], 1
    %440 = vsyncpa [#allocation4], 1

</llo_original>
